<compile_context>
chip_gen: v6e
topology: v6e:2x2x1
jax: 0.10.0
libtpu: 0.0.40
codegen_flags: <defaults>
</compile_context>

<pallas_src>
from functools import partial
from math import factorial as fac

import numpy as np
import jax
import jax.numpy as jnp
from jax import lax
from jax.experimental import pallas as pl
from jax.experimental.pallas import tpu as pltpu

F32_EPS = float(np.finfo(np.float32).eps)   # torch.finfo().eps for default float32
_NT = (((1,), (1,)), ((), ()))              # dot_general: contract last axis of both


# ----------------------------------------------------------------------------
# Glue: regular solid harmonics (stand-in for the external Ylm module).
# Y[l, m] (m <= l) holds Re(Y_lm * d^l); Y[m-1, l] (1 <= m <= l) holds Im(...).
# TODO(synk): external `Ylm` / `radial` modules are not available; a standard
#             solid-harmonics recursion and a Gaussian x (1 - r/rc)^2 cutoff
#             are used as deterministic synthetic replacements.
# ----------------------------------------------------------------------------
def _solid_harmonics(xyz, lmax):
    x, y, z = xyz[:, 0], xyz[:, 1], xyz[:, 2]
    r2 = x * x + y * y + z * z
    L1 = lmax + 1
    Re = [[None] * L1 for _ in range(L1)]
    Im = [[None] * L1 for _ in range(L1)]
    Re[0][0] = jnp.ones_like(x)
    Im[0][0] = jnp.zeros_like(x)
    for l in range(1, L1):
        cd = -np.sqrt((2 * l - 1) / (2.0 * l))
        Re[l][l] = cd * (x * Re[l - 1][l - 1] - y * Im[l - 1][l - 1])
        Im[l][l] = cd * (x * Im[l - 1][l - 1] + y * Re[l - 1][l - 1])
        for mm in range(l - 1, -1, -1):
            c1 = (2 * l - 1) / np.sqrt((l + mm) * (l - mm))
            Re[l][mm] = c1 * z * Re[l - 1][mm]
            Im[l][mm] = c1 * z * Im[l - 1][mm]
            if mm <= l - 2:
                c2 = np.sqrt(((l - 1 + mm) * (l - 1 - mm)) / ((l + mm) * (l - mm)))
                Re[l][mm] = Re[l][mm] - c2 * r2 * Re[l - 2][mm]
                Im[l][mm] = Im[l][mm] - c2 * r2 * Im[l - 2][mm]
    zero = jnp.zeros_like(x)
    grid = [[zero for _ in range(L1)] for _ in range(L1)]
    for l in range(L1):
        nl = np.sqrt((2 * l + 1) / (4.0 * np.pi))
        for mm in range(l + 1):
            grid[l][mm] = nl * Re[l][mm]
            if mm >= 1:
                grid[mm - 1][l] = nl * Im[l][mm]
    return jnp.stack([jnp.stack(row, axis=0) for row in grid], axis=0)  # (L1, L1, A)


def _atom_features(coo, lmax, nmax, rc):
    """Per-atom radial features f (N1, A) and flat harmonics Y_flat (L1*L1, A)."""
    unit = rc / 6.0                                   # atomic_unit=None default
    coo = jnp.asarray(coo, jnp.float32)
    xyz = coo / unit
    d = jnp.sqrt(jnp.sum(xyz * xyz, axis=-1))         # (A,)
    r_phys = unit * d
    # radial = Exp(-0.5*I()^2/unit^2) * radial  (synthetic radial: (1-r/rc)^2 cutoff)
    cut = jnp.where(r_phys < rc, (1.0 - r_phys / rc) ** 2, 0.0)
    r = jnp.exp(-0.5 * r_phys ** 2 / unit ** 2) * cut
    n_exp = 2.0 * jnp.arange(nmax + 1, dtype=jnp.float32)
    f = r[None, :] * d[None, :] ** n_exp[:, None]     # (N1, A)
    L1 = lmax + 1
    Y = _solid_harmonics(xyz, lmax)                   # (L1, L1, A)
    return f.astype(jnp.float32), Y.reshape(L1 * L1, -1).astype(jnp.float32)


def _soap_tables(lmax, nmax):
    """Constant Yr / Yi / nnl tables (tiny, numpy)."""
    L1, N1 = lmax + 1, nmax + 1
    one = np.ones((L1, L1), np.float32)
    Yr = (2.0 * np.tril(one) - np.eye(L1, dtype=np.float32)).astype(np.float32)
    Yi = (2.0 * np.triu(one, k=1)).astype(np.float32)
    a = np.array([[1.0 / ((2 * l + 1) * 2.0 ** (2 * n + l) * fac(n) * fac(n + l))
                   for l in range(L1)] for n in range(N1)], np.float64)
    nnl = np.sqrt(a[None, :, :] * a[:, None, :]).astype(np.float32)      # (N1, N1, L1)
    return Yr, Yi, nnl


# ----------------------------------------------------------------------------
# Pallas kernel: per-atom-tile density-coefficient accumulation.
#   packed_ref: (L1*L1 + N1 + S, a_tile)  rows = [Y_flat | f | mask]
#   c_ref:      (N1, S*L1*L1)             per-core-split accumulator (output)
# ----------------------------------------------------------------------------
def _density_kernel(packed_ref, c_ref, *, l1, n1, nspecies):
    L1L1 = l1 * l1
    ti = pl.program_id(1)          # atom-tile index within this core split

    @pl.when(ti == 0)
    def _init():
        c_ref[...] = jnp.zeros_like(c_ref)

    yf = packed_ref[0:L1L1, :]                                   # (L1*L1, At)
    f = packed_ref[L1L1:L1L1 + n1, :]                            # (N1,    At)
    m = packed_ref[L1L1 + n1:L1L1 + n1 + nspecies, :]            # (S,     At)

    # Stack species along the Y rows (8-aligned 16-row chunks) so the whole
    # tile reduces to ONE NT matmul and ONE accumulator read-modify-write:
    #   c[n, s*L1L1 + k] += sum_atoms f[n, i] * (mask[s, i] * Y[k, i])
    ym = jnp.concatenate([m[s:s + 1, :] * yf for s in range(nspecies)], axis=0)
    c_ref[...] += lax.dot_general(f, ym, _NT,
                                  preferred_element_type=jnp.float32)


# ----------------------------------------------------------------------------
# Jitted core: feature generation + pallas_call + tiny epilogue.
# ----------------------------------------------------------------------------
def _soap_core(coo_pad, mask_pad, *, lmax, nmax, rc, normalize,
               nspecies, a_tile, tpc, n_splits):
    N1, L1 = nmax + 1, lmax + 1
    S = nspecies
    L1L1 = L1 * L1

    # Per-atom features are produced directly at the padded size (no separate
    # jnp.pad pass) and fused into the single packed stream under jit.
    f, yf = _atom_features(coo_pad, lmax, nmax, rc)       # (N1, Ap), (L1*L1, Ap)
    packed = jnp.concatenate([yf, f, mask_pad], axis=0)   # (L1*L1+N1+S, Ap)
    n_rows = L1L1 + N1 + S

    kernel = partial(_density_kernel, l1=L1, n1=N1, nspecies=S)
    c_parts = pl.pallas_call(
        kernel,
        out_shape=jax.ShapeDtypeStruct((n_splits, N1, S * L1L1), jnp.float32),
        grid_spec=pltpu.PrefetchScalarGridSpec(
            num_scalar_prefetch=0,
            grid=(n_splits, tpc),
            in_specs=[
                # one packed stream -> one DMA per atom tile
                pl.BlockSpec((n_rows, a_tile),
                             lambda ci, ti: (0, ci * tpc + ti)),
            ],
            # per-core-split partial c, resident across the "arbitrary" axis
            out_specs=pl.BlockSpec((None, N1, S * L1L1),
                                   lambda ci, ti: (ci, 0, 0)),
        ),
        compiler_params=pltpu.CompilerParams(
            dimension_semantics=("parallel", "arbitrary")),
    )(packed)

    # ---- tiny epilogue (O(1) work): combine cores, m-contract, scale, norm --
    Yr, Yi, nnl = _soap_tables(lmax, nmax)
    c = c_parts.sum(axis=0).reshape(N1, S, L1, L1)         # sum core partials
    c = jnp.transpose(c, (1, 0, 2, 3))                     # (S, N1, L1, L1)
    nnp_ = c[None, :, None] * c[:, None, :, None]          # (S,S,N1,N1,L1,L1)
    p = (nnp_ * Yr).sum(-1) + (nnp_ * Yi).sum(-2)          # (S,S,N1,N1,L1)
    p = p * nnl
    if normalize:
        p = p / (jnp.linalg.norm(p) + F32_EPS)
    return p.reshape(S * S, N1 * N1 * L1)


_soap_core_jit = jax.jit(
    _soap_core,
    static_argnames=("lmax", "nmax", "rc", "normalize",
                     "nspecies", "a_tile", "tpc", "n_splits"))


# ----------------------------------------------------------------------------
# Wrapper (module forward, grad=False, flatten=True path).
# ----------------------------------------------------------------------------
def universal_soap_forward(coo, numbers, lmax, nmax, rc,
                           normalize=True, a_tile=8192, n_splits=2):
    numbers_np = np.asarray(numbers)
    coo_np = np.asarray(coo, np.float32)
    A = int(numbers_np.shape[0])
    species = np.unique(numbers_np)                   # sorted unique atomic numbers
    S = int(species.shape[0])
    N1, L1 = nmax + 1, lmax + 1

    def _round_up(x, m):
        return ((int(x) + m - 1) // m) * m

    # Atom tile: multiple of 128 lanes, as large as useful (clamped so the two
    # core splits get balanced work); double-buffered packed block stays well
    # under VMEM even at 8192 lanes on all generations.
    a_tile = max(128, min(_round_up(a_tile, 128),
                          _round_up(max(1, -(-A // n_splits)), 128)))
    tpc = max(1, -(-A // (n_splits * a_tile)))        # atom tiles per core split
    a_pad = n_splits * tpc * a_tile

    # Host-side padding of coo / numbers BEFORE feature generation, so the
    # producer writes already-padded buffers (padded atoms carry mask == 0 and
    # therefore contribute exactly zero inside the kernel).
    coo_pad = np.zeros((a_pad, 3), np.float32)
    coo_pad[:A] = coo_np
    num_pad = np.full((a_pad,), -1, dtype=np.int64)
    num_pad[:A] = numbers_np.astype(np.int64)
    mask_pad = (num_pad[None, :] == species.astype(np.int64)[:, None])
    mask_pad = mask_pad.astype(np.float32)            # (S, a_pad)

    p_flat = _soap_core_jit(jnp.asarray(coo_pad), jnp.asarray(mask_pad),
                            lmax=int(lmax), nmax=int(nmax), rc=float(rc),
                            normalize=bool(normalize), nspecies=S,
                            a_tile=int(a_tile), tpc=int(tpc),
                            n_splits=int(n_splits))

    dim = N1 * N1 * L1
    ab = np.stack([np.broadcast_to(species[None, :], (S, S)).reshape(-1),
                   np.broadcast_to(species[:, None], (S, S)).reshape(-1)])
    size = (119, 119, dim)
    # TODO(synk): torch.sparse_coo_tensor has no Pallas/JAX equivalent; the
    #             sparse_tensor=False tuple (ab, p, size) is returned instead.
    return ab, p_flat, size


# ----------------------------------------------------------------------------
# Pure-numpy (float64 contraction) reference of the same forward path.
# ----------------------------------------------------------------------------
def _reference_p(coo, numbers, lmax, nmax, rc, normalize):
    f, yf = _atom_features(jnp.asarray(coo, jnp.float32), lmax, nmax, rc)
    L1, N1 = lmax + 1, nmax + 1
    f = np.asarray(f, np.float64)
    Y = np.asarray(yf, np.float64).reshape(L1, L1, -1)
    numbers_np = np.asarray(numbers)
    species = np.unique(numbers_np)
    mask = (numbers_np[None, :] == species[:, None]).astype(np.float64)
    Yr, Yi, nnl = _soap_tables(lmax, nmax)

    ff = f[:, None, None, :] * Y[None]
    c = np.einsum('nabi,si->snab', ff, mask)
    nnp_ = c[None, :, None] * c[:, None, :, None]
    p = (nnp_ * Yr).sum(-1) + (nnp_ * Yi).sum(-2)
    p = p * nnl
    if normalize:
        p = p / (np.linalg.norm(p) + F32_EPS)
    return p.reshape(len(species) ** 2, -1)


if __name__ == "__main__":
    lmax, nmax, rc = 3, 3, 6.0
    key = jax.random.PRNGKey(0)
    k1, k2 = jax.random.split(key)

    # --- case 1: tiny system (8 atoms) -> a_tile clamps to 128, grid (2, 1) --
    coo1 = 2.0 * jax.random.normal(k1, (8, 3), dtype=jnp.float32)
    num1 = jnp.array([1, 1, 8, 8, 1, 8, 1, 8], dtype=jnp.int32)
    ab1, p1, size1 = universal_soap_forward(coo1, num1, lmax, nmax, rc, normalize=True)
    p1 = jax.block_until_ready(p1)

    S1 = len(np.unique(np.asarray(num1)))
    ref1 = _reference_p(coo1, num1, lmax, nmax, rc, True)
    p1n = np.asarray(p1)
    assert p1n.shape == (S1 * S1, (nmax + 1) * (nmax + 1) * (lmax + 1))
    assert ab1.shape == (2, S1 * S1)
    assert np.all(np.isfinite(p1n))
    np.testing.assert_allclose(p1n, ref1, rtol=1e-3, atol=2e-5)

    # --- case 2: 300 atoms, a_tile=128 -> grid (2 core splits, 2 tiles each) -
    natoms = 300
    coo2 = 2.0 * jax.random.normal(k2, (natoms, 3), dtype=jnp.float32)
    num2 = jnp.where(jnp.arange(natoms) % 3 == 0, 8, 1).astype(jnp.int32)
    ab2, p2, size2 = universal_soap_forward(coo2, num2, lmax, nmax, rc,
                                            normalize=True, a_tile=128)
    p2 = jax.block_until_ready(p2)

    S2 = len(np.unique(np.asarray(num2)))
    ref2 = _reference_p(coo2, num2, lmax, nmax, rc, True)
    p2n = np.asarray(p2)
    assert p2n.shape == (S2 * S2, (nmax + 1) * (nmax + 1) * (lmax + 1))
    assert np.all(np.isfinite(p2n))
    np.testing.assert_allclose(p2n, ref2, rtol=2e-3, atol=5e-5)

    print("KERNEL_OK")
</pallas_src>

<mosaic_0001>
module attributes {stable_mosaic.version = 11 : i64} {
  func.func @_density_kernel(%arg0: i32, %arg1: i32, %arg2: memref<22x128xf32, #tpu.memory_space<vmem>>, %arg3: memref<1x4x32xf32, #tpu.memory_space<vmem>>) attributes {dimension_semantics = [#tpu.dimension_semantics<parallel>, #tpu.dimension_semantics<arbitrary>], iteration_bounds = array<i64: 2, 1>, scalar_prefetch = 0 : i64, scratch_operands = 0 : i64, tpu.core_type = #tpu.core_type<tc>, window_params = [{transform_indices = @transform_0, window_bounds = array<i64: 22, 128>}, {transform_indices = @transform_1, window_bounds = array<i64: 1, 4, 32>}]} {
    %c0_i32 = arith.constant 0 : i32
    %0 = arith.cmpi eq, %arg1, %c0_i32 : i32
    %1 = arith.extui %0 : i1 to i32
    %c0_i32_0 = arith.constant 0 : i32
    %2 = arith.cmpi ne, %1, %c0_i32_0 : i32
    scf.if %2 {
      %cst_10 = arith.constant 0.000000e+00 : f32
      %20 = vector.broadcast %cst_10 : f32 to vector<4x32xf32>
      %c0_11 = arith.constant 0 : index
      %c0_12 = arith.constant 0 : index
      %c0_13 = arith.constant 0 : index
      %21 = vector.load %arg3[%c0_11, %c0_12, %c0_13] : memref<1x4x32xf32, #tpu.memory_space<vmem>>, vector<1x4x32xf32>
      %22 = vector.shape_cast %21 : vector<1x4x32xf32> to vector<4x32xf32>
      %23 = vector.shape_cast %20 : vector<4x32xf32> to vector<1x4x32xf32>
      tpu.vector_store %arg3[%c0_11, %c0_12, %c0_13], %23 {strides = array<i32>} : memref<1x4x32xf32, #tpu.memory_space<vmem>>, vector<1x4x32xf32>,
    } else {
    }
    %c0 = arith.constant 0 : index
    %c0_1 = arith.constant 0 : index
    %3 = vector.load %arg2[%c0, %c0_1] : memref<22x128xf32, #tpu.memory_space<vmem>>, vector<16x128xf32>
    %c16 = arith.constant 16 : index
    %c0_2 = arith.constant 0 : index
    %4 = vector.load %arg2[%c16, %c0_2] : memref<22x128xf32, #tpu.memory_space<vmem>>, vector<4x128xf32>
    %c20 = arith.constant 20 : index
    %c0_3 = arith.constant 0 : index
    %5 = vector.load %arg2[%c20, %c0_3] : memref<22x128xf32, #tpu.memory_space<vmem>>, vector<2x128xf32>
    %6 = vector.extract_strided_slice %5 {offsets = [0, 0], sizes = [1, 128], strides = [1, 1]} : vector<2x128xf32> to vector<1x128xf32>
    %7 = vector.broadcast %6 : vector<1x128xf32> to vector<16x128xf32>
    %8 = arith.mulf %7, %3 : vector<16x128xf32>
    %9 = vector.extract_strided_slice %5 {offsets = [1, 0], sizes = [1, 128], strides = [1, 1]} : vector<2x128xf32> to vector<1x128xf32>
    %10 = vector.broadcast %9 : vector<1x128xf32> to vector<16x128xf32>
    %11 = arith.mulf %10, %3 : vector<16x128xf32>
    %12 = tpu.concatenate %8, %11 in 0 : vector<16x128xf32>, vector<16x128xf32> -> vector<32x128xf32>
    %c0_4 = arith.constant 0 : index
    %c0_5 = arith.constant 0 : index
    %c0_6 = arith.constant 0 : index
    %13 = vector.load %arg3[%c0_4, %c0_5, %c0_6] : memref<1x4x32xf32, #tpu.memory_space<vmem>>, vector<1x4x32xf32>
    %14 = vector.shape_cast %13 : vector<1x4x32xf32> to vector<4x32xf32>
    %cst = arith.constant dense<0.000000e+00> : vector<4x32xf32>
    %15 = tpu.matmul %4, %12, %cst {dimension_numbers = #tpu.dot_dimension_numbers<[1], [1], [0], [0], [0, 0, 1, 0], [], []>} : vector<4x128xf32>, vector<32x128xf32>, vector<4x32xf32> -> vector<4x32xf32>
    %16 = arith.addf %14, %15 : vector<4x32xf32>
    %c0_7 = arith.constant 0 : index
    %c0_8 = arith.constant 0 : index
    %c0_9 = arith.constant 0 : index
    %17 = vector.load %arg3[%c0_7, %c0_8, %c0_9] : memref<1x4x32xf32, #tpu.memory_space<vmem>>, vector<1x4x32xf32>
    %18 = vector.shape_cast %17 : vector<1x4x32xf32> to vector<4x32xf32>
    %19 = vector.shape_cast %16 : vector<4x32xf32> to vector<1x4x32xf32>
    tpu.vector_store %arg3[%c0_7, %c0_8, %c0_9], %19 {strides = array<i32>} : memref<1x4x32xf32, #tpu.memory_space<vmem>>, vector<1x4x32xf32>,
    return
  }
  func.func @transform_0(%arg0: i32, %arg1: i32) -> (i32, i32) {
    %c1_i32 = arith.constant 1 : i32
    %0 = arith.muli %arg0, %c1_i32 : i32
    %1 = arith.addi %0, %arg1 : i32
    %c0_i32 = arith.constant 0 : i32
    %c0_i32_0 = arith.constant 0 : i32
    return %c0_i32, %1 : i32, i32
  }
  func.func @transform_1(%arg0: i32, %arg1: i32) -> (i32, i32, i32) {
    %c0_i32 = arith.constant 0 : i32
    %c0_i32_0 = arith.constant 0 : i32
    %c0_i32_1 = arith.constant 0 : i32
    return %arg0, %c0_i32, %c0_i32_0 : i32, i32, i32
  }
}

</mosaic_0001>

<llo_original>
// kernel: _soap_core.1
$region0: #{_soap_core.1}
  #allocation0 [shape = 'u32[]', space=smem, size = 0x4, offset = 0x4, fixed_abs, tag = 'smem constant byte address 0x4 - core index']
  #allocation1 [shape = 'u32[144,128]{1,0:T(1,128)}', space=vmem, size = 0x12000, scoped, tag = 'internal scratch']
  %s0 = inlined_call_operand.vmem [shape: f32[22,256], index: 0, kind: input, shape index: {}]
  %s1 = inlined_call_operand.vmem [shape: f32[2,4,32], index: 1, kind: output, shape index: {}]
  %s2 = sld [smem:[#allocation0]]
  $region79: #{_soap_core.1} parent=0
    _
  %s4 = ssub.s32 1, %s2
  %s5 = scalar_select 0, %s4, %s2
  $region1: #{_soap_core.1} parent=0
    #allocation2 [shape = 'u8[24576]{0}', space=vmem, size = 0x6000, scoped, tag = 'input window, operand 0']
    loop: start=0, step=1, limit=4
    $region2: #{_soap_core.1} parent=1 // loop_pre_header
      _
    $region3: #{_soap_core.1} parent=1 // loop_header
      %s7 = sphi 0, %s11
      %p8 = scmp.ge.s32.totalorder %s7, 4
      %s14 = sphi 0, %s26
      %s15 = sphi 0, %s22
      %s16 = sphi 0, %s14
      %s17 = sphi 0, %s15
      %s18 = sphi 0, %s16
      %s19 = sphi 0, %s17
      %s31 = sphi 0, %s33
      %s34 = sphi 0, %s31
      %s35 = sphi 0, %s34
      %s51 = sphi 0, %s35
      %s57 = sphi 0, %s59
      %s60 = sphi 0, %s57
      %s61 = sphi 0, %s60
      %s77 = sphi 0, %s61
    $region4: #{_soap_core.1} parent=1 // loop_header_branch
      %10 = sbr.rel (%p8) target = $region8
    $region5: #{_soap_core.1} parent=1 // loop_body
      %s12 = ssub.s32 %s7, 1
      %s13 = ssub.s32 %s7, 2
      %s20 = sadd.s32 1, %s15
      %p21 = scmp.ge.s32.totalorder %s20, 1
      %s22 = scalar_select %p21, 0, %s20
      %s23 = sadd.s32 1, %s14
      %s24 = scalar_select %p21, %s23, %s14
      %p25 = scmp.ge.s32.totalorder %s24, 2
      %s26 = scalar_select %p25, 0, %s24
      %s27 = sadd.s32 %s14, %s15
      %s28 = sadd.s32 %s26, %s22
      %s29 = ssub.s32 %s27, %s28
      %p30 = scmp.eq.s32.totalorder %s29, 0
      %s32 = sadd.s32 %s31, 1
      %s33 = scalar_select %p30, %s31, %s32
      %p36 = pneg %p30
      %p37 = scmp.eq.s32.totalorder %s7, 1
      %p38 = por %p36, %p37
      %p39 = scmp.ne.s32.totalorder %s31, %s34
      %p40 = scmp.eq.s32.totalorder %s7, 0
      %p41 = por %p39, %p40
      %p42 = scmp.ne.s32.totalorder %s31, %s34
      %p43 = scmp.eq.s32.totalorder %s12, 1
      %p44 = por %p42, %p43
      %p45 = scmp.ne.s32.totalorder %s34, %s35
      %p46 = scmp.eq.s32.totalorder %s12, 0
      %p47 = por %p45, %p46
      %p48 = scmp.ne.s32.totalorder %s34, %s35
      %p49 = scmp.eq.s32.totalorder %s13, 1
      %p50 = por %p48, %p49
      %p52 = scmp.ne.s32.totalorder %s35, %s51
      %p53 = scmp.eq.s32.totalorder %s13, 0
      %p54 = por %p52, %p53
      %s55 = ssub.s32 %s14, %s26
      %p56 = scmp.eq.s32.totalorder %s55, 0
      %s58 = sadd.s32 %s57, 1
      %s59 = scalar_select %p56, %s57, %s58
      %p62 = pneg %p56
      %p63 = scmp.eq.s32.totalorder %s7, 1
      %p64 = por %p62, %p63
      %p65 = scmp.ne.s32.totalorder %s57, %s60
      %p66 = scmp.eq.s32.totalorder %s7, 0
      %p67 = por %p65, %p66
      %p68 = scmp.ne.s32.totalorder %s57, %s60
      %p69 = scmp.eq.s32.totalorder %s12, 1
      %p70 = por %p68, %p69
      %p71 = scmp.ne.s32.totalorder %s60, %s61
      %p72 = scmp.eq.s32.totalorder %s12, 0
      %p73 = por %p71, %p72
      %p74 = scmp.ne.s32.totalorder %s60, %s61
      %p75 = scmp.eq.s32.totalorder %s13, 1
      %p76 = por %p74, %p75
      %p78 = scmp.ne.s32.totalorder %s61, %s77
      %p79 = scmp.eq.s32.totalorder %s13, 0
      %p80 = por %p78, %p79
      %p81 = scmp.le.s32.totalorder 1, %s7
      %p82 = scmp.lt.s32.totalorder %s7, 3
      %p83 = pnand %p81, %p82
      %p84 = pneg %p83
      // Predicated region
      $region9: #{_soap_core.1} parent=5 // pred_check
        _
      $region10: #{_soap_core.1} parent=5 // pred_check_branch
        %86 = sbr.rel (%p83) target = $region12
      $region11: #{_soap_core.1} parent=5 // pred_region
        %s87 = ssub.s32 %s7, 1
      $region12: #{_soap_core.1} parent=5 // pred_fallthru
        _
      %p88 = scmp.lt.s32.totalorder %s7, 2
      // Predicated region
      $region13: #{_soap_core.1} parent=5 // pred_check
        %p89 = pneg %p88
      $region14: #{_soap_core.1} parent=5 // pred_check_branch
        %91 = sbr.rel (%p89) target = $region16
      $region15: #{_soap_core.1} parent=5 // pred_region
        // Predicated region
        $region17: #{_soap_core.1} parent=15 // pred_check
          %p92 = pneg %p41
        $region18: #{_soap_core.1} parent=15 // pred_check_branch
          %94 = sbr.rel (%p92) target = $region20
        $region19: #{_soap_core.1} parent=15 // pred_region
          %s95 = sand.u32 %s31, 1
          %s96 = sand.u32 %s31, 1
          %s97 = smul.addr %s96, 24
          %s98 = scalar_lea.vmem [#allocation2], %s97
          %s99 = sadd.s32 %s14, %s15
          %s100 = smul.addr %s99, 8
          %s101 = scalar_lea.vmem %s0, %s100
          // Predicated region
          $region21: #{_soap_core.1} parent=19 // pred_check
            _
          $region22: #{_soap_core.1} parent=19 // pred_check_branch
            %103 = sbr.rel (0) target = $region24
          $region23: #{_soap_core.1} parent=19 // pred_region
            // Predicated region
            $region25: #{_soap_core.1} parent=23 // pred_check
              _
            $region26: #{_soap_core.1} parent=23 // pred_check_branch
              %105 = sbr.rel (0) target = $region28
            $region27: #{_soap_core.1} parent=23 // pred_region
              // Predicated region
              $region40: #{_soap_core.1} parent=27 // pred_check
                _
              $region41: #{_soap_core.1} parent=27 // pred_check_branch
                %125 = sbr.rel (0) target = $region43
              $region42: #{_soap_core.1} parent=27 // pred_region
                loop: start=0, step=1, limit=1
                $region44: #{_soap_core.1} parent=42 // loop_pre_header
                  _
                $region45: #{_soap_core.1} parent=42 // loop_header
                  %s127 = sphi 0, %s131
                  %p128 = scmp.ge.s32.totalorder %s127, 1
                  %s132 = sphi %s101, %s101
                  %s133 = sphi %s98, %s98
                $region46: #{_soap_core.1} parent=42 // loop_header_branch
                  %130 = sbr.rel (%p128) target = $region50
                $region47: #{_soap_core.1} parent=42 // loop_body
                  %v134 = vld [vmem:[%s132] sm:$0xff]
                  %135 = vst [vmem:[%s133] sm:$0xff] %v134
                  %v136 = vld [vmem:[%s132 + $0x10] sm:$0xff]
                  %137 = vst [vmem:[%s133 + $0x8] sm:$0xff] %v136
                  %v138 = vld [vmem:[%s132 + $0x20] sm:$0xff]
                  %139 = vst [vmem:[%s133 + $0x10] sm:$0xff] %v138
                $region48: #{_soap_core.1} parent=42 // loop_footer
                  %s131 = sadd.s32 1, %s127
                $region49: #{_soap_core.1} parent=42 // loop_footer_branch
                  %126 = sbr.rel target = $region45
                $region50: #{_soap_core.1} parent=42 // loop_exit
                  _
              $region43: #{_soap_core.1} parent=27 // pred_fallthru
                _
              // Predicated region
              $region51: #{_soap_core.1} parent=27 // pred_check
                _
              $region52: #{_soap_core.1} parent=27 // pred_check_branch
                %141 = sbr.rel target = $region54
              $region53: #{_soap_core.1} parent=27 // pred_region
                _
              $region54: #{_soap_core.1} parent=27 // pred_fallthru
                _
            $region28: #{_soap_core.1} parent=23 // pred_fallthru
              _
            // Predicated region
            $region29: #{_soap_core.1} parent=23 // pred_check
              _
            $region30: #{_soap_core.1} parent=23 // pred_check_branch
              %107 = sbr.rel target = $region32
            $region31: #{_soap_core.1} parent=23 // pred_region
              %s109 = ssub.s32 256, 1
              loop: start=0, step=1, limit=1
              $region33: #{_soap_core.1} parent=31 // loop_pre_header
                _
              $region34: #{_soap_core.1} parent=31 // loop_header
                %s111 = sphi 0, %s115
                %p112 = scmp.ge.s32.totalorder %s111, 1
                %s116 = sphi %s101, %s101
                %s117 = sphi %s98, %s98
              $region35: #{_soap_core.1} parent=31 // loop_header_branch
                %114 = sbr.rel (%p112) target = $region39
              $region36: #{_soap_core.1} parent=31 // loop_body
                %v118 = vld [vmem:[%s116] sm:%s109]
                %119 = vst [vmem:[%s117] sm:%s109] %v118
                %v120 = vld [vmem:[%s116 + $0x10] sm:%s109]
                %121 = vst [vmem:[%s117 + $0x8] sm:%s109] %v120
                %v122 = vld [vmem:[%s116 + $0x20] sm:%s109]
                %123 = vst [vmem:[%s117 + $0x10] sm:%s109] %v122
              $region37: #{_soap_core.1} parent=31 // loop_footer
                %s115 = sadd.s32 1, %s111
              $region38: #{_soap_core.1} parent=31 // loop_footer_branch
                %110 = sbr.rel target = $region34
              $region39: #{_soap_core.1} parent=31 // loop_exit
                _
            $region32: #{_soap_core.1} parent=23 // pred_fallthru
              _
          $region24: #{_soap_core.1} parent=19 // pred_fallthru
            _
          %142 = vnop
        $region20: #{_soap_core.1} parent=15 // pred_fallthru
          _
      $region16: #{_soap_core.1} parent=5 // pred_fallthru
        _
      %p143 = scmp.le.s32.totalorder 1, %s7
      %p144 = scmp.lt.s32.totalorder %s7, 3
      %p145 = pnand %p143, %p144
      %p146 = pneg %p145
      // Predicated region
      $region55: #{_soap_core.1} parent=5 // pred_check
        _
      $region56: #{_soap_core.1} parent=5 // pred_check_branch
        %148 = sbr.rel (%p145) target = $region58
      $region57: #{_soap_core.1} parent=5 // pred_region
        %s149 = ssub.s32 %s7, 1
        %s150 = sand.u32 %s34, 1
        %s151 = sand.u32 %s34, 1
        %s152 = smul.addr %s151, 24
        %s153 = scalar_lea.vmem [#allocation2], %s152
        // Predicated region
        $region59: #{_soap_core.1} parent=57 // pred_check
          %p154 = pneg %p47
        $region60: #{_soap_core.1} parent=57 // pred_check_branch
          %156 = sbr.rel (%p154) target = $region62
        $region61: #{_soap_core.1} parent=57 // pred_region
          _
        $region62: #{_soap_core.1} parent=57 // pred_fallthru
          _
        %s157 = sand.u32 %s34, 1
        %s158 = sand.u32 %s34, 1
        %s159 = smul.addr %s158, 24
        %s160 = scalar_lea.vmem [#allocation2], %s159
        %p161 = pneg %p47
        %p162 = pneg %p44
        %p163 = pneg %p73
        %p164 = pneg %p70
        %p165 = scmp.lt.s32.totalorder %s16, 1
        %s166 = scalar_select %p165, %s16, 1
        %s167 = smul.addr %s166, 4
        %s168 = scalar_lea.vmem %s1, %s167
        %s169 = sadd.s32 %s16, %s17
        %p170 = scmp.lt.s32.totalorder %s16, 1
        %s171 = scalar_select %p170, %s16, 1
        %s172 = smul.addr %s171, 4
        %s173 = scalar_lea.vmem %s1, %s172
        %p174 = scmp.eq.s32.totalorder %s17, 0
        // Predicated region
        $region63: #{_soap_core.1} parent=57 // pred_check
          %p175 = pneg %p174
        $region64: #{_soap_core.1} parent=57 // pred_check_branch
          %177 = sbr.rel (%p175) target = $region66
        $region65: #{_soap_core.1} parent=57 // pred_region
          %vm178 = vcmask 257024
          %179 = vst.msk [vmem:[%s173] sm:$0xf] %vm178, 0.0
        $region66: #{_soap_core.1} parent=57 // pred_fallthru
          _
        %v180 = vld [vmem:[%s153] sm:$0xff]
        %v181 = vld [vmem:[%s153 + $0x8] sm:$0xff]
        %v182 = vld [vmem:[%s153 + $0x10] sm:$0xf]
        %v183 = vld [vmem:[%s153 + $0x14] sm:$0x3]
        %v184 = vlaneseq
        %v185 = vshrl.u32 %v184, 7
        %v186 = vsub.s32 0, %v185
        %v187 = vrot.slane %v183, %v186
        %v188 = vmul.f32 %v187, %v180
        %v189 = vmul.f32 %v187, %v181
        %v190 = vlaneseq
        %v191 = vshrl.u32 %v190, 7
        %v192 = vsub.s32 1, %v191
        %v193 = vrot.slane %v183, %v192
        %v194 = vmul.f32 %v193, %v180
        %v195 = vmul.f32 %v193, %v181
        %v196 = vld [vmem:[%s173] sm:$0xf]
        %197 = vmatprep.subr.mxu0 0.0
        %198 = vmatpush1.xpose.msra.mxu0 0.0
        %199 = vmatprep.subr.mxu0 0.0
        %200 = vmatpush1.xpose.msra.mxu0 0.0
        %201 = vmatprep.subr.mxu0 0.0
        %202 = vmatpush1.xpose.msra.mxu0 0.0
        %203 = vmatprep.subr.mxu0 0.0
        %204 = vmatpush1.xpose.msra.mxu0 0.0
        %205 = vmatprep.subr.mxu0 0.0
        %206 = vmatpush1.xpose.msra.mxu0 0.0
        %207 = vmatprep.subr.mxu0 0.0
        %208 = vmatpush1.xpose.msra.mxu0 0.0
        %209 = vmatprep.subr.mxu0 0.0
        %210 = vmatpush1.xpose.msra.mxu0 0.0
        %211 = vmatprep.subr.mxu0 0.0
        %212 = vmatpush1.xpose.msra.mxu0 0.0
        %213 = vmatprep.subr.mxu0 0.0
        %214 = vmatpush1.xpose.msra.mxu0 0.0
        %215 = vmatprep.subr.mxu0 0.0
        %216 = vmatpush1.xpose.msra.mxu0 0.0
        %217 = vmatprep.subr.mxu0 0.0
        %218 = vmatpush1.xpose.msra.mxu0 0.0
        %219 = vmatprep.subr.mxu0 0.0
        %220 = vmatpush1.xpose.msra.mxu0 0.0
        %221 = vmatprep.subr.mxu0 0.0
        %222 = vmatpush1.xpose.msra.mxu0 %v195
        %223 = vmatprep.subr.mxu0 0.0
        %224 = vmatpush1.xpose.msra.mxu0 %v194
        %225 = vmatprep.subr.mxu0 0.0
        %226 = vmatpush1.xpose.msra.mxu0 %v189
        %227 = vmatprep.subr.mxu0 0.0
        %228 = vmatpush1.xpose.msra.mxu0 %v188
        %229 = vmatprep.subr.mxu0 0.0
        %230 = vmatpush2.xpose.msra.mxu0 0.0
        %231 = vmatprep.subr.mxu0 0.0
        %232 = vmatpush2.xpose.msra.mxu0 0.0
        %233 = vmatprep.subr.mxu0 0.0
        %234 = vmatpush2.xpose.msra.mxu0 0.0
        %235 = vmatprep.subr.mxu0 0.0
        %236 = vmatpush2.xpose.msra.mxu0 0.0
        %237 = vmatprep.subr.mxu0 0.0
        %238 = vmatpush2.xpose.msra.mxu0 0.0
        %239 = vmatprep.subr.mxu0 0.0
        %240 = vmatpush2.xpose.msra.mxu0 0.0
        %241 = vmatprep.subr.mxu0 0.0
        %242 = vmatpush2.xpose.msra.mxu0 0.0
        %243 = vmatprep.subr.mxu0 0.0
        %244 = vmatpush2.xpose.msra.mxu0 0.0
        %245 = vmatprep.subr.mxu0 0.0
        %246 = vmatpush2.xpose.msra.mxu0 0.0
        %247 = vmatprep.subr.mxu0 0.0
        %248 = vmatpush2.xpose.msra.mxu0 0.0
        %249 = vmatprep.subr.mxu0 0.0
        %250 = vmatpush2.xpose.msra.mxu0 0.0
        %251 = vmatprep.subr.mxu0 0.0
        %252 = vmatpush2.xpose.msra.mxu0 0.0
        %253 = vmatprep.subr.mxu0 0.0
        %254 = vmatpush2.xpose.msra.mxu0 0.0
        %255 = vmatprep.subr.mxu0 0.0
        %256 = vmatpush2.xpose.msra.mxu0 0.0
        %257 = vmatprep.subr.mxu0 0.0
        %258 = vmatpush2.xpose.msra.mxu0 0.0
        %259 = vmatprep.subr.mxu0 0.0
        %260 = vmatpush2.xpose.msra.mxu0 0.0
        %261 = vmatprep.mubr.f32.mxu0 0.0
        %262 = vmatmul.mubr.f32.gmra.mxu0 %v182
        %v263 = vpop.f32.mrf.mxu0
        %v264 = vadd.f32 0.0, %v263
        %v265 = vpop.f32.mrf.mxu0
        %266 = vdwg.mxu0
        %v267 = vadd.f32 %v196, %v264
        %vm268 = vcmask 257024
        %269 = vst.msk [vmem:[%s173] sm:$0xf] %vm268, %v267
        %p270 = scmp.lt.s32.totalorder %s16, 1
        %s271 = scalar_select %p270, %s16, 1
        %s272 = smul.addr %s271, 4
        %s273 = scalar_lea.vmem %s1, %s272
        // Predicated region
        $region67: #{_soap_core.1} parent=57 // pred_check
          %p274 = pneg %p70
        $region68: #{_soap_core.1} parent=57 // pred_check_branch
          %276 = sbr.rel (%p274) target = $region70
        $region69: #{_soap_core.1} parent=57 // pred_region
          _
        $region70: #{_soap_core.1} parent=57 // pred_fallthru
          _
      $region58: #{_soap_core.1} parent=5 // pred_fallthru
        _
      %p277 = scmp.le.s32.totalorder 2, %s7
      // Predicated region
      $region71: #{_soap_core.1} parent=5 // pred_check
        %p278 = pneg %p277
      $region72: #{_soap_core.1} parent=5 // pred_check_branch
        %280 = sbr.rel (%p278) target = $region74
      $region73: #{_soap_core.1} parent=5 // pred_region
        %s281 = ssub.s32 %s7, 2
        // Predicated region
        $region75: #{_soap_core.1} parent=73 // pred_check
          %p282 = pneg %p76
        $region76: #{_soap_core.1} parent=73 // pred_check_branch
          %284 = sbr.rel (%p282) target = $region78
        $region77: #{_soap_core.1} parent=73 // pred_region
          %p285 = scmp.lt.s32.totalorder %s18, 1
          %s286 = scalar_select %p285, %s18, 1
          %s287 = smul.addr %s286, 4
          %s288 = scalar_lea.vmem %s1, %s287
        $region78: #{_soap_core.1} parent=73 // pred_fallthru
          _
      $region74: #{_soap_core.1} parent=5 // pred_fallthru
        _
    $region6: #{_soap_core.1} parent=1 // loop_footer
      %s11 = sadd.s32 1, %s7
    $region7: #{_soap_core.1} parent=1 // loop_footer_branch
      %6 = sbr.rel target = $region3
    $region8: #{_soap_core.1} parent=1 // loop_exit
      _

</llo_original>
